<compile_context>
chip_gen: v7x
topology: tpu7x:2x2x1
jax: 0.10.0
libtpu: 0.0.40
codegen_flags: <defaults>
</compile_context>

<pallas_src>
import jax
import jax.numpy as jnp
from jax.experimental import pallas as pl
from jax.experimental.pallas import tpu as pltpu


def _dma_copy_kernel(*refs):
    """refs = (in_hbm_refs..., out_hbm_refs..., dma_sem).

    Issues one HBM->HBM DMA per (input, output) pair, then waits on all of
    them.  Starting every copy before waiting lets the DMA engine stream
    them back-to-back / concurrently.
    """
    n = (len(refs) - 1) // 2
    in_refs = refs[:n]
    out_refs = refs[n:2 * n]
    sem = refs[-1]

    copies = [
        pltpu.make_async_copy(src, dst, sem.at[i])
        for i, (src, dst) in enumerate(zip(in_refs, out_refs))
    ]
    for cp in copies:
        cp.start()
    for cp in copies:
        cp.wait()


def _pallas_copy_arrays(arrays):
    """Physically copy a list of arrays with ONE pallas_call (one DMA each)."""
    n = len(arrays)
    total_bytes = sum(
        int(a.size) * jnp.dtype(a.dtype).itemsize for a in arrays
    )
    out = pl.pallas_call(
        _dma_copy_kernel,
        out_shape=tuple(jax.ShapeDtypeStruct(a.shape, a.dtype) for a in arrays),
        in_specs=[pl.BlockSpec(memory_space=pl.ANY)] * n,
        out_specs=tuple(pl.BlockSpec(memory_space=pl.ANY) for _ in range(n)),
        scratch_shapes=[pltpu.SemaphoreType.DMA((n,))],
        cost_estimate=pl.CostEstimate(
            flops=0, transcendentals=0, bytes_accessed=2 * total_bytes),
    )(*arrays)
    return list(out)


def cst_forward(batch_dict: dict, *, copy: bool = False) -> dict:
    """JAX/Pallas equivalent of cst.forward.

    Default (`copy=False`): returns `batch_dict` unchanged — the faithful,
    zero-cost translation of the identity module (no kernel launched).

    `copy=True`: array-valued entries are routed through a single Pallas
    call that performs one HBM->HBM DMA per array, producing fresh output
    buffers while keeping identical values.
    """
    if not copy:
        # Pure identity: no kernel, no HBM traffic.
        return batch_dict

    out = {}
    keys, arrays = [], []
    for k, v in batch_dict.items():
        if isinstance(v, jax.Array) and v.size > 0:
            keys.append(k)
            arrays.append(v)
        else:
            out[k] = v
    if arrays:
        copied = _pallas_copy_arrays(arrays)
        for k, c in zip(keys, copied):
            out[k] = c
    return out


if __name__ == "__main__":
    key = jax.random.PRNGKey(0)
    k1, k2 = jax.random.split(key)

    # Small shapes consistent with a detection-backbone batch_dict.
    batch_dict = {
        "spatial_features": jax.random.normal(k1, (2, 4, 16, 16), dtype=jnp.float32),
        "voxel_features": jax.random.normal(k2, (8, 32), dtype=jnp.float32),
        "batch_size": 2,
    }

    # 1) Default forward: fully elided identity (no kernel), exactly like the
    #    PyTorch module.
    result = cst_forward(batch_dict)
    assert result["spatial_features"] is batch_dict["spatial_features"]
    assert result["voxel_features"] is batch_dict["voxel_features"]
    assert result["batch_size"] == 2

    # 2) Optional physical-copy path: exercises the Pallas HBM->HBM DMA kernel
    #    once (single launch for both arrays) and verifies bit-exactness.
    copied = cst_forward(batch_dict, copy=True)
    jax.block_until_ready(copied["spatial_features"])
    jax.block_until_ready(copied["voxel_features"])
    assert copied["spatial_features"].shape == (2, 4, 16, 16)
    assert copied["voxel_features"].shape == (8, 32)
    assert jnp.array_equal(copied["spatial_features"], batch_dict["spatial_features"])
    assert jnp.array_equal(copied["voxel_features"], batch_dict["voxel_features"])
    assert copied["batch_size"] == 2

    print("KERNEL_OK")
</pallas_src>

<mosaic_0001>
module attributes {stable_mosaic.version = 11 : i64} {
  func.func @_dma_copy_kernel(%arg0: memref<2x4x16x16xf32, #tpu.memory_space<any>>, %arg1: memref<8x32xf32, #tpu.memory_space<any>>, %arg2: memref<2x4x16x16xf32, #tpu.memory_space<any>>, %arg3: memref<8x32xf32, #tpu.memory_space<any>>, %arg4: memref<2x!tpu.dma_semaphore, #tpu.memory_space<semaphore_mem>>) attributes {dimension_semantics = [], scalar_prefetch = 0 : i64, scratch_operands = 1 : i64, tpu.core_type = #tpu.core_type<tc>} {
    %c0_i32 = arith.constant 0 : i32
    %0 = tpu.memref_slice %arg4[%c0_i32] : memref<2x!tpu.dma_semaphore, #tpu.memory_space<semaphore_mem>> -> memref<1x!tpu.dma_semaphore, #tpu.memory_space<semaphore_mem>>
    %1 = tpu.memref_squeeze %0 : memref<1x!tpu.dma_semaphore, #tpu.memory_space<semaphore_mem>> -> memref<!tpu.dma_semaphore, #tpu.memory_space<semaphore_mem>>
    tpu.enqueue_dma source(%arg0 : memref<2x4x16x16xf32, #tpu.memory_space<any>>) target(%arg2 : memref<2x4x16x16xf32, #tpu.memory_space<any>>) target_semaphore(%1 : memref<!tpu.dma_semaphore, #tpu.memory_space<semaphore_mem>>)
    %c1_i32 = arith.constant 1 : i32
    %2 = tpu.memref_slice %arg4[%c1_i32] : memref<2x!tpu.dma_semaphore, #tpu.memory_space<semaphore_mem>> -> memref<1x!tpu.dma_semaphore, #tpu.memory_space<semaphore_mem>>
    %3 = tpu.memref_squeeze %2 : memref<1x!tpu.dma_semaphore, #tpu.memory_space<semaphore_mem>> -> memref<!tpu.dma_semaphore, #tpu.memory_space<semaphore_mem>>
    tpu.enqueue_dma source(%arg1 : memref<8x32xf32, #tpu.memory_space<any>>) target(%arg3 : memref<8x32xf32, #tpu.memory_space<any>>) target_semaphore(%3 : memref<!tpu.dma_semaphore, #tpu.memory_space<semaphore_mem>>)
    %c0_i32_0 = arith.constant 0 : i32
    %4 = tpu.memref_slice %arg4[%c0_i32_0] : memref<2x!tpu.dma_semaphore, #tpu.memory_space<semaphore_mem>> -> memref<1x!tpu.dma_semaphore, #tpu.memory_space<semaphore_mem>>
    %5 = tpu.memref_squeeze %4 : memref<1x!tpu.dma_semaphore, #tpu.memory_space<semaphore_mem>> -> memref<!tpu.dma_semaphore, #tpu.memory_space<semaphore_mem>>
    tpu.wait_dma2 semaphore(%5 : memref<!tpu.dma_semaphore, #tpu.memory_space<semaphore_mem>>) src(%arg0 : memref<2x4x16x16xf32, #tpu.memory_space<any>>) dst(%arg2 : memref<2x4x16x16xf32, #tpu.memory_space<any>>)
    %c1_i32_1 = arith.constant 1 : i32
    %6 = tpu.memref_slice %arg4[%c1_i32_1] : memref<2x!tpu.dma_semaphore, #tpu.memory_space<semaphore_mem>> -> memref<1x!tpu.dma_semaphore, #tpu.memory_space<semaphore_mem>>
    %7 = tpu.memref_squeeze %6 : memref<1x!tpu.dma_semaphore, #tpu.memory_space<semaphore_mem>> -> memref<!tpu.dma_semaphore, #tpu.memory_space<semaphore_mem>>
    tpu.wait_dma2 semaphore(%7 : memref<!tpu.dma_semaphore, #tpu.memory_space<semaphore_mem>>) src(%arg1 : memref<8x32xf32, #tpu.memory_space<any>>) dst(%arg3 : memref<8x32xf32, #tpu.memory_space<any>>)
    return
  }
}

</mosaic_0001>

<llo_original>
// kernel: tpu_custom_call.1
$region0: #{tpu_custom_call.1}
  #allocation0 [shape = 'u32[]', space=smem, size = 0x4, offset = 0x4, fixed_abs, tag = 'smem constant byte address 0x4 - core index']
  #allocation1 [shape = 'u32[144,128]{1,0:T(1,128)}', space=vmem, size = 0x12000, scoped, tag = 'internal scratch']
  #allocation2 [shape = 's32[2]{0}', space=sflag, size = 0x8, scoped, tag = 'scratch operand']
  #allocation3 [shape = 's32[]', space=sflag, size = 0x4, offset = 0, fixed_abs, tag = 'sflag constant byte address 0x0 - dummy sync flag']
  #allocation4 [shape = 'u32[0]{0}', space=smem, size = 0, offset = 0, fixed_abs, tag = 'smem constant byte address 0x0 - null']
  #allocation5 [shape = 's32[]', space=sflag, size = 0x4, offset = 0, fixed_abs, tag = 'sflag constant byte address 0x0 - dummy sync flag']
  #allocation6 [shape = 'u32[0]{0}', space=smem, size = 0, offset = 0, fixed_abs, tag = 'smem constant byte address 0x0 - null']
  %s0 = inlined_call_operand.hbm [shape: f32[2,4,16,16], index: 0, kind: input, shape index: {}]
  %s1 = inlined_call_operand.hbm [shape: f32[8,32], index: 1, kind: input, shape index: {}]
  %s2 = inlined_call_operand.hbm [shape: f32[2,4,16,16], index: 2, kind: output, shape index: {0}]
  %s3 = inlined_call_operand.hbm [shape: f32[8,32], index: 3, kind: output, shape index: {1}]
  %4 = xla_tuple %s2, %s3
  %s5 = sld [smem:[#allocation0]]
  $region2: #{tpu_custom_call.1} parent=0
    _
  %s7 = ssub.s32 1, %s5
  %s8 = scalar_select 0, %s7, %s5
  %s10 = sshll.u32 1, 14
  %s11 = sxor.u32 4294967295, %s10
  %s14 = sshll.u32 3, 24
  %s15 = sxor.u32 4294967295, %s14
  %s16 = sand.u32 0, %s15
  %s18 = sor.u32 %s16, 0
  %21 = dma.general %s0, 2048, %s2, [#allocation2], [#allocation3], [#allocation4], %s18, 0
  %s22 = scalar_lea.sflag [#allocation2], 1
  %s24 = sshll.u32 1, 14
  %s25 = sxor.u32 4294967295, %s24
  %s28 = sshll.u32 3, 24
  %s29 = sxor.u32 4294967295, %s28
  %s30 = sand.u32 0, %s29
  %s32 = sor.u32 %s30, 0
  %35 = dma.general %s1, 128, %s3, %s22, [#allocation5], [#allocation6], %s32, 0
  %s36 = smul.u32 2, 4
  %s37 = smul.u32 %s36, 16
  %s38 = smul.u32 %s37, 1
  %s39 = sshll.u32 %s38, 4
  %40 = dma.done [#allocation2], %s39
  %s41 = smul.u32 8, 1
  %s42 = sshll.u32 %s41, 4
  %43 = dma.done %s22, %s42
  %44 = vsyncmov [#allocation2]
  %s45 = vpop.sfrf %44
  %p46 = scmp.eq.s32.totalorder %s45, 0
  %p47 = pneg %p46
  %49 = shalt.err (%p47)
  %s50 = scalar_lea.sflag [#allocation2], 1
  %51 = vsyncmov %s50
  %s52 = vpop.sfrf %51
  %p53 = scmp.eq.s32.totalorder %s52, 0
  %p54 = pneg %p53
  %56 = shalt.err (%p54)

</llo_original>
